<compile_context>
chip_gen: v6e
topology: v6e:2x2x1
jax: 0.10.0
libtpu: 0.0.40
codegen_flags: <defaults>
</compile_context>

<pallas_src>
import math

import jax
import jax.numpy as jnp
from jax.experimental import pallas as pl
from jax.experimental.pallas import tpu as pltpu

# pl.reciprocal(approx=True) maps to the EUP `vrcp` under Mosaic; keep a portable
# exact-divide path for non-TPU backends (the sandbox interpret run lowers on CPU).
_ON_TPU = jax.default_backend() == "tpu"


def _recip(x):
    if _ON_TPU:
        return pl.reciprocal(x, approx=True)
    return 1.0 / x


def _cdropout_kernel(params_ref, x_ref, noise_ref, y_ref):
    """One (block_b, block_f) tile: build the concrete mask from noise, multiply x."""
    logit_p = params_ref[0]      # scalar f32 (SMEM)
    inv_temp = params_ref[1]     # scalar f32 (SMEM)

    x = x_ref[...]                                # native dtype, no f32 widening
    u = noise_ref[...].astype(jnp.float32)        # mask math in f32

    # log(u) - log(1-u) == log(u * (1/(1-u))): one EUP log + one (approx) reciprocal.
    log_odds = jnp.log(u * _recip(1.0 - u))
    # log(p) - log(1-p) == logit_p exactly (p = sigmoid(logit_p)).
    z = (logit_p + log_odds) * inv_temp
    # sigmoid(z) = 1 / (1 + exp(-z)); reciprocal goes to the EUP slot on TPU.
    mask = _recip(1.0 + jnp.exp(-z))

    # Cast only the mask; keep the multiply in x's dtype (bf16 VALU on v6e/v7x).
    y_ref[...] = (x * mask.astype(x_ref.dtype)).astype(y_ref.dtype)


def _choose_blocks(B, F, itemsize, vmem_budget_bytes):
    """Pick (block_b, block_f): lane-dense feature blocks, a VMEM byte budget for the
    3 tiles (x, noise, y) x 2 pipeline buffers, and >= 2 grid steps when possible."""
    # Feature block: last dim must be a multiple of 128 or the full extent.
    if F % 128 == 0:
        block_f = min(F, 1024)
    else:
        block_f = F
    # Batch block from the byte budget (3 arrays, double-buffered).
    n_buffered = 3 * 2
    max_rows = max(8, vmem_budget_bytes // (n_buffered * block_f * itemsize))
    if max_rows >= B:
        block_b = B
    else:
        block_b = max(8, (max_rows // 8) * 8)
    # Force >= 2 grid steps so pipelining overlaps DMA with compute and the parallel
    # axes can shard across the two v7x TensorCores (split batch, else features).
    if block_b >= B and block_f >= F:
        if B >= 16:
            block_b = max(8, ((B // 2) // 8) * 8)
        elif F % 128 == 0 and F >= 256:
            block_f = max(128, ((F // 2) // 128) * 128)
    return block_b, block_f


def cdropout_forward(x, *, rate=0.5, temperature=0.1, key=None, noise=None,
                     vmem_budget_bytes=6 * 1024 * 1024):
    """Pallas implementation of CDropout.forward.

    resample=True  -> leave `noise=None` and pass a PRNG `key`; a fresh uniform draw
                      in x.dtype (== torch.rand_like(x)) is made and returned.
    resample=False -> pass the previously stored `noise` (same shape/dtype as x).

    Returns (y, noise): y = x * concrete_noise; `noise` is what the PyTorch module
    stores into its `self.noise` buffer.
    """
    if noise is None:
        if key is None:
            key = jax.random.PRNGKey(0)
        noise = jax.random.uniform(key, x.shape, dtype=x.dtype)   # torch.rand_like(x)

    orig_shape = x.shape
    if x.ndim == 1:
        x2, n2 = x.reshape(1, -1), noise.reshape(1, -1)
    elif x.ndim == 2:
        x2, n2 = x, noise
    else:  # collapse leading dims; keep the last dim on the lane axis
        x2, n2 = x.reshape(-1, x.shape[-1]), noise.reshape(-1, x.shape[-1])
    B, F = x2.shape

    logit_p = -math.log(1.0 / (1.0 - rate) - 1.0)
    params = jnp.array([logit_p, 1.0 / temperature], dtype=jnp.float32)

    itemsize = jnp.dtype(x.dtype).itemsize
    block_b, block_f = _choose_blocks(B, F, itemsize, vmem_budget_bytes)
    grid = (pl.cdiv(B, block_b), pl.cdiv(F, block_f))

    # Memory-bound elementwise op: tell XLA's scheduler.
    nbytes = B * F * itemsize
    cost = pl.CostEstimate(
        flops=10 * B * F,            # adds / muls / casts of the mask math
        transcendentals=3 * B * F,   # log, exp, reciprocal
        bytes_accessed=3 * nbytes,   # read x, read noise, write y
    )

    # Raise scoped VMEM only in pathological cases (huge non-128-multiple F).
    tile_bytes = 6 * block_b * block_f * itemsize
    cp_kwargs = dict(dimension_semantics=("parallel", "parallel"))  # fully independent tiles
    if tile_bytes > 12 * 1024 * 1024:
        cp_kwargs["vmem_limit_bytes"] = int(min(2 * tile_bytes, 64 * 1024 * 1024))

    y = pl.pallas_call(
        _cdropout_kernel,
        out_shape=jax.ShapeDtypeStruct((B, F), x.dtype),
        grid=grid,
        in_specs=[
            pl.BlockSpec(memory_space=pltpu.MemorySpace.SMEM),        # [logit_p, 1/temp]
            pl.BlockSpec((block_b, block_f), lambda i, j: (i, j)),    # x tile
            pl.BlockSpec((block_b, block_f), lambda i, j: (i, j)),    # noise tile
        ],
        out_specs=pl.BlockSpec((block_b, block_f), lambda i, j: (i, j)),  # lane-dense y
        compiler_params=pltpu.CompilerParams(**cp_kwargs),
        cost_estimate=cost,
    )(params, x2, n2)

    # TODO(synk): repeat_mask=True (tiling a smaller stored mask over the batch) is
    # module-state plumbing outside this elementwise kernel.
    return y.reshape(orig_shape), noise


def _reference(x, noise, logit_p, temp):
    """Plain-JAX mirror of the PyTorch forward, given the same noise."""
    p = jax.nn.sigmoid(jnp.float32(logit_p))
    u = noise.astype(jnp.float32)
    concrete_p = (jnp.log(p) - jnp.log(1.0 - p) + jnp.log(u) - jnp.log(1.0 - u))
    concrete_noise = jax.nn.sigmoid(concrete_p / temp)
    return x * concrete_noise.astype(x.dtype)


if __name__ == "__main__":
    # Small MLP-activation-shaped example (how CDropout is used in prob_mbrl).
    B, F = 16, 256
    rate, temp = 0.3, 0.1

    kx, kn = jax.random.split(jax.random.PRNGKey(0))
    x = jax.random.normal(kx, (B, F), dtype=jnp.float32)

    # resample=True path: fresh uniform noise drawn in the wrapper (rand_like).
    y, noise = cdropout_forward(x, rate=rate, temperature=temp, key=kn)
    jax.block_until_ready((y, noise))

    assert y.shape == x.shape and y.dtype == x.dtype
    assert noise.shape == x.shape and noise.dtype == x.dtype
    assert bool(jnp.all(noise >= 0.0)) and bool(jnp.all(noise < 1.0))

    # Verify the concrete-dropout math against the torch formulation using the same
    # noise. On TPU the approx EUP reciprocals give a few-% mask tolerance; since
    # y = x * mask, bound the error elementwise by |x|.
    logit_p = -math.log(1.0 / (1.0 - rate) - 1.0)
    y_ref = _reference(x, noise, logit_p, temp)
    assert bool(jnp.all(jnp.abs(y - y_ref) <= 0.06 * jnp.abs(x) + 1e-5))
    if jax.default_backend() != "tpu":
        # exact-divide fallback path must match tightly
        assert jnp.allclose(y, y_ref, atol=1e-4, rtol=1e-4)

    # resample=False path: reusing the stored noise reproduces the output exactly.
    y2, noise2 = cdropout_forward(x, rate=rate, temperature=temp, noise=noise)
    jax.block_until_ready((y2, noise2))
    assert jnp.array_equal(noise, noise2) and jnp.array_equal(y, y2)

    print("KERNEL_OK")
</pallas_src>

<mosaic_0001>
module attributes {stable_mosaic.version = 11 : i64} {
  func.func @_cdropout_kernel(%arg0: i32, %arg1: i32, %arg2: memref<2xf32, #tpu.memory_space<smem>>, %arg3: memref<8x256xf32, #tpu.memory_space<vmem>>, %arg4: memref<8x256xf32, #tpu.memory_space<vmem>>, %arg5: memref<8x256xf32, #tpu.memory_space<vmem>>) attributes {dimension_semantics = [#tpu.dimension_semantics<parallel>, #tpu.dimension_semantics<parallel>], iteration_bounds = array<i64: 2, 1>, scalar_prefetch = 0 : i64, scratch_operands = 0 : i64, tpu.core_type = #tpu.core_type<tc>, window_params = [{transform_indices = @transform_0, window_bounds = array<i64: 2>}, {transform_indices = @transform_1, window_bounds = array<i64: 8, 256>}, {transform_indices = @transform_2, window_bounds = array<i64: 8, 256>}, {transform_indices = @transform_3, window_bounds = array<i64: 8, 256>}]} {
    %c0 = arith.constant 0 : index
    %0 = memref.load %arg2[%c0] : memref<2xf32, #tpu.memory_space<smem>>
    %c1 = arith.constant 1 : index
    %1 = memref.load %arg2[%c1] : memref<2xf32, #tpu.memory_space<smem>>
    %c0_0 = arith.constant 0 : index
    %c0_1 = arith.constant 0 : index
    %2 = vector.load %arg3[%c0_0, %c0_1] : memref<8x256xf32, #tpu.memory_space<vmem>>, vector<8x256xf32>
    %c0_2 = arith.constant 0 : index
    %c0_3 = arith.constant 0 : index
    %3 = vector.load %arg4[%c0_2, %c0_3] : memref<8x256xf32, #tpu.memory_space<vmem>>, vector<8x256xf32>
    %cst = arith.constant 1.000000e+00 : f32
    %4 = vector.broadcast %cst : f32 to vector<8x256xf32>
    %5 = arith.subf %4, %3 : vector<8x256xf32>
    %cst_4 = arith.constant 1.000000e+00 : f32
    %6 = vector.broadcast %cst_4 : f32 to vector<8x256xf32>
    %7 = arith.divf %6, %5 : vector<8x256xf32>
    %8 = arith.mulf %3, %7 : vector<8x256xf32>
    %9 = math.log %8 : vector<8x256xf32>
    %10 = vector.broadcast %0 : f32 to vector<8x256xf32>
    %11 = arith.addf %10, %9 : vector<8x256xf32>
    %12 = vector.broadcast %1 : f32 to vector<8x256xf32>
    %13 = arith.mulf %11, %12 : vector<8x256xf32>
    %cst_5 = arith.constant 0.000000e+00 : f32
    %14 = vector.broadcast %cst_5 : f32 to vector<8x256xf32>
    %15 = arith.subf %14, %13 : vector<8x256xf32>
    %16 = math.exp %15 : vector<8x256xf32>
    %cst_6 = arith.constant 1.000000e+00 : f32
    %17 = vector.broadcast %cst_6 : f32 to vector<8x256xf32>
    %18 = arith.addf %17, %16 : vector<8x256xf32>
    %cst_7 = arith.constant 1.000000e+00 : f32
    %19 = vector.broadcast %cst_7 : f32 to vector<8x256xf32>
    %20 = arith.divf %19, %18 : vector<8x256xf32>
    %21 = arith.mulf %2, %20 : vector<8x256xf32>
    %c0_8 = arith.constant 0 : index
    %c0_9 = arith.constant 0 : index
    %22 = vector.load %arg5[%c0_8, %c0_9] : memref<8x256xf32, #tpu.memory_space<vmem>>, vector<8x256xf32>
    tpu.vector_store %arg5[%c0_8, %c0_9], %21 {strides = array<i32>} : memref<8x256xf32, #tpu.memory_space<vmem>>, vector<8x256xf32>,
    return
  }
  func.func @transform_0(%arg0: i32, %arg1: i32) -> i32 {
    %c0_i32 = arith.constant 0 : i32
    %c0_i32_0 = arith.constant 0 : i32
    return %c0_i32 : i32
  }
  func.func @transform_1(%arg0: i32, %arg1: i32) -> (i32, i32) {
    %c0_i32 = arith.constant 0 : i32
    return %arg0, %arg1 : i32, i32
  }
  func.func @transform_2(%arg0: i32, %arg1: i32) -> (i32, i32) {
    %c0_i32 = arith.constant 0 : i32
    return %arg0, %arg1 : i32, i32
  }
  func.func @transform_3(%arg0: i32, %arg1: i32) -> (i32, i32) {
    %c0_i32 = arith.constant 0 : i32
    return %arg0, %arg1 : i32, i32
  }
}

</mosaic_0001>

<llo_original>
// kernel: tpu_custom_call.1
$region0: #{tpu_custom_call.1}
  #allocation0 [shape = 'u32[]', space=smem, size = 0x4, offset = 0x4, fixed_abs, tag = 'smem constant byte address 0x4 - core index']
  #allocation1 [shape = 'u32[144,128]{1,0:T(1,128)}', space=vmem, size = 0x12000, scoped, tag = 'internal scratch']
  %s0 = inlined_call_operand.hbm [shape: f32[2], index: 0, kind: input, shape index: {}]
  %s1 = inlined_call_operand.hbm [shape: f32[16,256], index: 1, kind: input, shape index: {}]
  %s2 = inlined_call_operand.hbm [shape: f32[16,256], index: 2, kind: input, shape index: {}]
  %s3 = inlined_call_operand.hbm [shape: f32[16,256], index: 3, kind: output, shape index: {}]
  %s4 = sld [smem:[#allocation0]]
  $region57: #{tpu_custom_call.1} parent=0
    _
  %s6 = ssub.s32 1, %s4
  %s7 = scalar_select 0, %s6, %s4
  $region1: #{tpu_custom_call.1} parent=0
    #allocation2 [shape = 'u8[512]{0}', space=smem, size = 0x200, scoped, tag = 'input window, operand 0, single buffered']
    #allocation3 [shape = 's32[2]{0}', space=sflag, size = 0x8, scoped, tag = 'scoped memory for tpu_custom_call.1']
    #allocation4 [shape = 's32[2]{0}', space=sflag, size = 0x8, scoped, tag = 'scoped memory for tpu_custom_call.1']
    #allocation5 [shape = 's32[2]{0}', space=sflag, size = 0x8, scoped, tag = 'scoped memory for tpu_custom_call.1']
    #allocation6 [shape = 'u8[16384]{0}', space=vmem, size = 0x4000, scoped, tag = 'input window, operand 1']
    #allocation7 [shape = 'u8[16384]{0}', space=vmem, size = 0x4000, scoped, tag = 'input window, operand 2']
    #allocation8 [shape = 's32[2]{0}', space=sflag, size = 0x8, scoped, tag = 'scoped memory for tpu_custom_call.1']
    #allocation9 [shape = 'u8[16384]{0}', space=vmem, size = 0x4000, scoped, tag = 'output window, operand 0']
    %8 = vsyncpa [#allocation5], 0
    %9 = vsyncpa [#allocation3], 0
    %s10 = scalar_lea.sflag [#allocation3], 1
    %11 = vsyncpa %s10, 0
    %12 = vsyncpa [#allocation8], 0
    %s13 = scalar_lea.sflag [#allocation8], 1
    %14 = vsyncpa %s13, 0
    %15 = vsyncpa [#allocation4], 0
    %s16 = scalar_lea.sflag [#allocation4], 1
    %17 = vsyncpa %s16, 0
    loop: start=0, step=1, limit=4
    $region2: #{tpu_custom_call.1} parent=1 // loop_pre_header
      _
    $region3: #{tpu_custom_call.1} parent=1 // loop_header
      %s19 = sphi 0, %s23
      %p20 = scmp.ge.s32.totalorder %s19, 4
      %s26 = sphi 0, %s38
      %s27 = sphi 0, %s34
      %s28 = sphi 0, %s26
      %s29 = sphi 0, %s27
      %s30 = sphi 0, %s28
      %s31 = sphi 0, %s29
      %s39 = sphi 0, %s39
      %s41 = sphi 0, %s39
      %s42 = sphi 0, %s41
      %s56 = sphi 0, %s42
      %s64 = sphi 0, %s66
      %s67 = sphi 0, %s64
      %s68 = sphi 0, %s67
      %s84 = sphi 0, %s68
      %s92 = sphi 0, %s94
      %s95 = sphi 0, %s92
      %s96 = sphi 0, %s95
      %s112 = sphi 0, %s96
      %s120 = sphi 0, %s122
      %s123 = sphi 0, %s120
      %s124 = sphi 0, %s123
      %s140 = sphi 0, %s124
    $region4: #{tpu_custom_call.1} parent=1 // loop_header_branch
      %22 = sbr.rel (%p20) target = $region8
    $region5: #{tpu_custom_call.1} parent=1 // loop_body
      %s24 = ssub.s32 %s19, 1
      %s25 = ssub.s32 %s19, 2
      %s32 = sadd.s32 1, %s27
      %p33 = scmp.ge.s32.totalorder %s32, 1
      %s34 = scalar_select %p33, 0, %s32
      %s35 = sadd.s32 1, %s26
      %s36 = scalar_select %p33, %s35, %s26
      %p37 = scmp.ge.s32.totalorder %s36, 2
      %s38 = scalar_select %p37, 0, %s36
      %s40 = sadd.s32 %s39, 1
      %p43 = scmp.eq.s32.totalorder %s19, 1
      %p44 = scmp.ne.s32.totalorder %s39, %s41
      %p45 = scmp.eq.s32.totalorder %s19, 0
      %p46 = por %p44, %p45
      %p47 = scmp.ne.s32.totalorder %s39, %s41
      %p48 = scmp.eq.s32.totalorder %s24, 1
      %p49 = por %p47, %p48
      %p50 = scmp.ne.s32.totalorder %s41, %s42
      %p51 = scmp.eq.s32.totalorder %s24, 0
      %p52 = por %p50, %p51
      %p53 = scmp.ne.s32.totalorder %s41, %s42
      %p54 = scmp.eq.s32.totalorder %s25, 1
      %p55 = por %p53, %p54
      %p57 = scmp.ne.s32.totalorder %s42, %s56
      %p58 = scmp.eq.s32.totalorder %s25, 0
      %p59 = por %p57, %p58
      %s60 = ssub.s32 %s26, %s38
      %s61 = ssub.s32 %s27, %s34
      %s62 = sor.u32 %s60, %s61
      %p63 = scmp.eq.s32.totalorder %s62, 0
      %s65 = sadd.s32 %s64, 1
      %s66 = scalar_select %p63, %s64, %s65
      %p69 = pneg %p63
      %p70 = scmp.eq.s32.totalorder %s19, 1
      %p71 = por %p69, %p70
      %p72 = scmp.ne.s32.totalorder %s64, %s67
      %p73 = scmp.eq.s32.totalorder %s19, 0
      %p74 = por %p72, %p73
      %p75 = scmp.ne.s32.totalorder %s64, %s67
      %p76 = scmp.eq.s32.totalorder %s24, 1
      %p77 = por %p75, %p76
      %p78 = scmp.ne.s32.totalorder %s67, %s68
      %p79 = scmp.eq.s32.totalorder %s24, 0
      %p80 = por %p78, %p79
      %p81 = scmp.ne.s32.totalorder %s67, %s68
      %p82 = scmp.eq.s32.totalorder %s25, 1
      %p83 = por %p81, %p82
      %p85 = scmp.ne.s32.totalorder %s68, %s84
      %p86 = scmp.eq.s32.totalorder %s25, 0
      %p87 = por %p85, %p86
      %s88 = ssub.s32 %s26, %s38
      %s89 = ssub.s32 %s27, %s34
      %s90 = sor.u32 %s88, %s89
      %p91 = scmp.eq.s32.totalorder %s90, 0
      %s93 = sadd.s32 %s92, 1
      %s94 = scalar_select %p91, %s92, %s93
      %p97 = pneg %p91
      %p98 = scmp.eq.s32.totalorder %s19, 1
      %p99 = por %p97, %p98
      %p100 = scmp.ne.s32.totalorder %s92, %s95
      %p101 = scmp.eq.s32.totalorder %s19, 0
      %p102 = por %p100, %p101
      %p103 = scmp.ne.s32.totalorder %s92, %s95
      %p104 = scmp.eq.s32.totalorder %s24, 1
      %p105 = por %p103, %p104
      %p106 = scmp.ne.s32.totalorder %s95, %s96
      %p107 = scmp.eq.s32.totalorder %s24, 0
      %p108 = por %p106, %p107
      %p109 = scmp.ne.s32.totalorder %s95, %s96
      %p110 = scmp.eq.s32.totalorder %s25, 1
      %p111 = por %p109, %p110
      %p113 = scmp.ne.s32.totalorder %s96, %s112
      %p114 = scmp.eq.s32.totalorder %s25, 0
      %p115 = por %p113, %p114
      %s116 = ssub.s32 %s26, %s38
      %s117 = ssub.s32 %s27, %s34
      %s118 = sor.u32 %s116, %s117
      %p119 = scmp.eq.s32.totalorder %s118, 0
      %s121 = sadd.s32 %s120, 1
      %s122 = scalar_select %p119, %s120, %s121
      %p125 = pneg %p119
      %p126 = scmp.eq.s32.totalorder %s19, 1
      %p127 = por %p125, %p126
      %p128 = scmp.ne.s32.totalorder %s120, %s123
      %p129 = scmp.eq.s32.totalorder %s19, 0
      %p130 = por %p128, %p129
      %p131 = scmp.ne.s32.totalorder %s120, %s123
      %p132 = scmp.eq.s32.totalorder %s24, 1
      %p133 = por %p131, %p132
      %p134 = scmp.ne.s32.totalorder %s123, %s124
      %p135 = scmp.eq.s32.totalorder %s24, 0
      %p136 = por %p134, %p135
      %p137 = scmp.ne.s32.totalorder %s123, %s124
      %p138 = scmp.eq.s32.totalorder %s25, 1
      %p139 = por %p137, %p138
      %p141 = scmp.ne.s32.totalorder %s124, %s140
      %p142 = scmp.eq.s32.totalorder %s25, 0
      %p143 = por %p141, %p142
      %p144 = scmp.le.s32.totalorder 1, %s19
      %p145 = scmp.lt.s32.totalorder %s19, 3
      %p146 = pnand %p144, %p145
      %p147 = pneg %p146
      // Predicated region
      $region9: #{tpu_custom_call.1} parent=5 // pred_check
        _
      $region10: #{tpu_custom_call.1} parent=5 // pred_check_branch
        %149 = sbr.rel (%p146) target = $region12
      $region11: #{tpu_custom_call.1} parent=5 // pred_region
        %s150 = ssub.s32 %s19, 1
        // Predicated region
        $region13: #{tpu_custom_call.1} parent=11 // pred_check
          %p151 = pneg %p52
        $region14: #{tpu_custom_call.1} parent=11 // pred_check_branch
          %153 = sbr.rel (%p151) target = $region16
        $region15: #{tpu_custom_call.1} parent=11 // pred_region
          %s155 = ssub.s32 16, 16
          %156 = vsyncadd [#allocation5], %s155
          %159 = dma.hbm_to_smem %s0, 16, [#allocation2], [#allocation5]
        $region16: #{tpu_custom_call.1} parent=11 // pred_fallthru
          _
      $region12: #{tpu_custom_call.1} parent=5 // pred_fallthru
        _
      %p160 = scmp.lt.s32.totalorder %s19, 2
      // Predicated region
      $region17: #{tpu_custom_call.1} parent=5 // pred_check
        %p161 = pneg %p160
      $region18: #{tpu_custom_call.1} parent=5 // pred_check_branch
        %163 = sbr.rel (%p161) target = $region20
      $region19: #{tpu_custom_call.1} parent=5 // pred_region
        // Predicated region
        $region21: #{tpu_custom_call.1} parent=19 // pred_check
          %p164 = pneg %p74
        $region22: #{tpu_custom_call.1} parent=19 // pred_check_branch
          %166 = sbr.rel (%p164) target = $region24
        $region23: #{tpu_custom_call.1} parent=19 // pred_region
          %s167 = sand.u32 %s64, 1
          %s168 = scalar_lea.sflag [#allocation3], %s167
          %s169 = sand.u32 %s64, 1
          %s170 = smul.addr %s169, 16
          %s171 = scalar_lea.vmem [#allocation6], %s170
          %s172 = smul.u32 2, %s27
          %s174 = ssub.s32 256, 256
          %175 = vsyncadd %s168, %s174
          %s176 = smul.addr %s26, 2
          %s177 = sadd.s32 %s172, %s176
          %s178 = smul.addr %s177, 128
          %s179 = scalar_lea.hbm %s1, %s178
          %s181 = sshll.u32 %s171, 4
          %s182 = int_to_ptr.vmem [resolvable:$true] %s181
          %184 = dma.hbm_to_vmem [thread:$0]  %s179, 256, %s182, %s168
        $region24: #{tpu_custom_call.1} parent=19 // pred_fallthru
          _
        // Predicated region
        $region25: #{tpu_custom_call.1} parent=19 // pred_check
          %p185 = pneg %p102
        $region26: #{tpu_custom_call.1} parent=19 // pred_check_branch
          %187 = sbr.rel (%p185) target = $region28
        $region27: #{tpu_custom_call.1} parent=19 // pred_region
          %s188 = sand.u32 %s92, 1
          %s189 = scalar_lea.sflag [#allocation8], %s188
          %s190 = sand.u32 %s92, 1
          %s191 = smul.addr %s190, 16
          %s192 = scalar_lea.vmem [#allocation7], %s191
          %s193 = smul.u32 2, %s27
          %s195 = ssub.s32 256, 256
          %196 = vsyncadd %s189, %s195
          %s197 = smul.addr %s26, 2
          %s198 = sadd.s32 %s193, %s197
          %s199 = smul.addr %s198, 128
          %s200 = scalar_lea.hbm %s2, %s199
          %s202 = sshll.u32 %s192, 4
          %s203 = int_to_ptr.vmem [resolvable:$true] %s202
          %205 = dma.hbm_to_vmem [thread:$0]  %s200, 256, %s203, %s189
        $region28: #{tpu_custom_call.1} parent=19 // pred_fallthru
          _
      $region20: #{tpu_custom_call.1} parent=5 // pred_fallthru
        _
      %p206 = scmp.le.s32.totalorder 1, %s19
      %p207 = scmp.lt.s32.totalorder %s19, 3
      %p208 = pnand %p206, %p207
      %p209 = pneg %p208
      // Predicated region
      $region29: #{tpu_custom_call.1} parent=5 // pred_check
        _
      $region30: #{tpu_custom_call.1} parent=5 // pred_check_branch
        %211 = sbr.rel (%p208) target = $region32
      $region31: #{tpu_custom_call.1} parent=5 // pred_region
        %s212 = ssub.s32 %s19, 1
        // Predicated region
        $region33: #{tpu_custom_call.1} parent=31 // pred_check
          %p213 = pneg %p52
        $region34: #{tpu_custom_call.1} parent=31 // pred_check_branch
          %215 = sbr.rel (%p213) target = $region36
        $region35: #{tpu_custom_call.1} parent=31 // pred_region
          %216 = dma.done [#allocation5], 16
        $region36: #{tpu_custom_call.1} parent=31 // pred_fallthru
          _
        %s217 = sand.u32 %s67, 1
        %s218 = scalar_lea.sflag [#allocation3], %s217
        %s219 = sand.u32 %s67, 1
        %s220 = smul.addr %s219, 16
        %s221 = scalar_lea.vmem [#allocation6], %s220
        // Predicated region
        $region37: #{tpu_custom_call.1} parent=31 // pred_check
          %p222 = pneg %p80
        $region38: #{tpu_custom_call.1} parent=31 // pred_check_branch
          %224 = sbr.rel (%p222) target = $region40
        $region39: #{tpu_custom_call.1} parent=31 // pred_region
          %225 = dma.done %s218, 256
        $region40: #{tpu_custom_call.1} parent=31 // pred_fallthru
          _
        %s226 = sand.u32 %s95, 1
        %s227 = scalar_lea.sflag [#allocation8], %s226
        %s228 = sand.u32 %s95, 1
        %s229 = smul.addr %s228, 16
        %s230 = scalar_lea.vmem [#allocation7], %s229
        // Predicated region
        $region41: #{tpu_custom_call.1} parent=31 // pred_check
          %p231 = pneg %p108
        $region42: #{tpu_custom_call.1} parent=31 // pred_check_branch
          %233 = sbr.rel (%p231) target = $region44
        $region43: #{tpu_custom_call.1} parent=31 // pred_region
          %234 = dma.done %s227, 256
        $region44: #{tpu_custom_call.1} parent=31 // pred_fallthru
          _
        %235 = sfence
        %p236 = pneg %p52
        %p237 = pneg %p49
        %s238 = sand.u32 %s67, 1
        %s239 = scalar_lea.sflag [#allocation3], %s238
        %s240 = sand.u32 %s67, 1
        %s241 = smul.addr %s240, 16
        %s242 = scalar_lea.vmem [#allocation6], %s241
        %p243 = pneg %p80
        %p244 = pneg %p77
        %s245 = sand.u32 %s95, 1
        %s246 = scalar_lea.sflag [#allocation8], %s245
        %s247 = sand.u32 %s95, 1
        %s248 = smul.addr %s247, 16
        %s249 = scalar_lea.vmem [#allocation7], %s248
        %p250 = pneg %p108
        %p251 = pneg %p105
        %p252 = pneg %p136
        %p253 = pneg %p133
        %s254 = sand.u32 %s123, 1
        %s255 = scalar_lea.sflag [#allocation4], %s254
        %s256 = sand.u32 %s123, 1
        %s257 = smul.addr %s256, 16
        %s258 = scalar_lea.vmem [#allocation9], %s257
        %s259 = smul.u32 2, %s29
        %s260 = smul.u32 2, %s29
        %s261 = smul.u32 2, %s29
        %s262 = sld [smem:[#allocation2]]
        %s263 = sld [smem:[#allocation2 + $0x1]]
        %v264 = vld [vmem:[%s221] sm:$0xff]
        %v265 = vld [vmem:[%s221 + $0x8] sm:$0xff]
        %v266 = vld [vmem:[%s230] sm:$0xff]
        %v267 = vld [vmem:[%s230 + $0x8] sm:$0xff]
        %v268 = vsub.f32 1.0, %v266
        %v269 = vsub.f32 1.0, %v267
        %v270 = vrcp.pop %v268
        %v271 = vmul.f32 1.0, %v270
        %v272 = vrcp.pop %v269
        %v273 = vmul.f32 1.0, %v272
        %v274 = vmul.f32 %v266, %v271
        %v275 = vmul.f32 %v267, %v273
        %v276 = vlog2.pop %v274
        %v277 = vmul.f32 %v276, 0.6931472
        %v278 = vlog2.pop %v275
        %v279 = vmul.f32 %v278, 0.6931472
        %v280 = vstv %s262
        %v281 = vadd.f32 %v280, %v277
        %v282 = vadd.f32 %v280, %v279
        %v283 = vstv %s263
        %v284 = vmul.f32 %v281, %v283
        %v285 = vmul.f32 %v282, %v283
        %v286 = vsub.f32 0.0, %v284
        %v287 = vsub.f32 0.0, %v285
        %v288 = vmul.f32 %v286, 1.442695
        %v289 = vpow.pop %v288
        %v290 = vmul.f32 %v287, 1.442695
        %v291 = vpow.pop %v290
        %v292 = vadd.f32 %v289, 1.0
        %v293 = vadd.f32 %v291, 1.0
        %v294 = vrcp.pop %v292
        %v295 = vmul.f32 1.0, %v294
        %v296 = vrcp.pop %v293
        %v297 = vmul.f32 1.0, %v296
        %v298 = vmul.f32 %v264, %v295
        %v299 = vmul.f32 %v265, %v297
        %300 = vst [vmem:[%s258] sm:$0xff] %v298
        %301 = vst [vmem:[%s258 + $0x8] sm:$0xff] %v299
        %s302 = sand.u32 %s123, 1
        %s303 = scalar_lea.sflag [#allocation4], %s302
        %s304 = sand.u32 %s123, 1
        %s305 = smul.addr %s304, 16
        %s306 = scalar_lea.vmem [#allocation9], %s305
        // Predicated region
        $region45: #{tpu_custom_call.1} parent=31 // pred_check
          %p307 = pneg %p133
        $region46: #{tpu_custom_call.1} parent=31 // pred_check_branch
          %309 = sbr.rel (%p307) target = $region48
        $region47: #{tpu_custom_call.1} parent=31 // pred_region
          %s310 = smul.u32 2, %s29
          %s312 = ssub.s32 256, 256
          %313 = vsyncadd %s303, %s312
          %s314 = smul.addr %s28, 2
          %s315 = sadd.s32 %s310, %s314
          %s316 = smul.addr %s315, 128
          %s317 = scalar_lea.hbm %s3, %s316
          %s319 = sshll.u32 %s306, 4
          %s320 = int_to_ptr.vmem [resolvable:$true] %s319
          %322 = dma.vmem_to_hbm [thread:$0]  %s320, 256, %s317, %s303
        $region48: #{tpu_custom_call.1} parent=31 // pred_fallthru
          _
      $region32: #{tpu_custom_call.1} parent=5 // pred_fallthru
        _
      %p323 = scmp.le.s32.totalorder 2, %s19
      // Predicated region
      $region49: #{tpu_custom_call.1} parent=5 // pred_check
        %p324 = pneg %p323
      $region50: #{tpu_custom_call.1} parent=5 // pred_check_branch
        %326 = sbr.rel (%p324) target = $region52
      $region51: #{tpu_custom_call.1} parent=5 // pred_region
        %s327 = ssub.s32 %s19, 2
        // Predicated region
        $region53: #{tpu_custom_call.1} parent=51 // pred_check
          %p328 = pneg %p139
        $region54: #{tpu_custom_call.1} parent=51 // pred_check_branch
          %330 = sbr.rel (%p328) target = $region56
        $region55: #{tpu_custom_call.1} parent=51 // pred_region
          %s331 = sand.u32 %s124, 1
          %s332 = scalar_lea.sflag [#allocation4], %s331
          %s333 = sand.u32 %s124, 1
          %s334 = smul.addr %s333, 16
          %s335 = scalar_lea.vmem [#allocation9], %s334
          %336 = dma.done %s332, 256
        $region56: #{tpu_custom_call.1} parent=51 // pred_fallthru
          _
      $region52: #{tpu_custom_call.1} parent=5 // pred_fallthru
        _
    $region6: #{tpu_custom_call.1} parent=1 // loop_footer
      %s23 = sadd.s32 1, %s19
    $region7: #{tpu_custom_call.1} parent=1 // loop_footer_branch
      %18 = sbr.rel target = $region3
    $region8: #{tpu_custom_call.1} parent=1 // loop_exit
      _
    %337 = vsyncpa [#allocation3], 1
    %s338 = scalar_lea.sflag [#allocation3], 1
    %339 = vsyncpa %s338, 1
    %340 = vsyncpa [#allocation8], 1
    %s341 = scalar_lea.sflag [#allocation8], 1
    %342 = vsyncpa %s341, 1
    %343 = vsyncpa [#allocation4], 1
    %s344 = scalar_lea.sflag [#allocation4], 1
    %345 = vsyncpa %s344, 1
    %346 = vsyncpa [#allocation5], 1
    %s347 = scalar_lea.sflag [#allocation5], 1
    %348 = vsyncpa %s347, 1

</llo_original>
